<compile_context>
chip_gen: v7x
topology: tpu7x:2x2x1
jax: 0.10.0
libtpu: 0.0.40
codegen_flags: <defaults>
</compile_context>

<pallas_src>
import math

import jax
import jax.numpy as jnp
from jax.experimental import pallas as pl
from jax.experimental.pallas import tpu as pltpu


_MAX_TILE_ROWS = 512                 # cap on rows per grid step
_VMEM_BUDGET_BYTES = 3 * 1024 * 1024  # per-buffer budget; 4 bufs stay < 16 MiB
                                      # (v5e scoped VMEM), far under v7x 32 MiB.


def _round_up(x, m):
    return ((x + m - 1) // m) * m


def _native_sublane(dtype):
    # 8 sublanes for 32-bit, 16 for 16-bit, 32 for 8-bit packed dtypes.
    itemsize = jnp.dtype(dtype).itemsize
    return max(8, 32 // max(1, itemsize))


# ----------------------------------------------------------------------------
# Kernels
# ----------------------------------------------------------------------------
def _softmax_kernel(invt_sref, x_ref, o_ref):
    """Single-tensor path: softmax(x * inv_t, axis=-1). inv_t in SMEM."""
    inv_t = invt_sref[0]                                   # scalar from SMEM
    x = x_ref[...].astype(jnp.float32) * inv_t             # free scalar splat
    m = jnp.max(x, axis=-1, keepdims=True)                 # XLU reduce
    e = jnp.exp(x - m)                                     # EUP
    s = jnp.sum(e, axis=-1, keepdims=True)                 # XLU reduce
    o_ref[...] = (e * pl.reciprocal(s, approx=True)).astype(o_ref.dtype)


def _packed_softmax_kernel(_rowblk_sref, invt_sref, vcols_sref, slab_ref, o_ref):
    """Packed path: one row-block of one tensor per grid step.

    Columns >= vcols[g] are lane padding (slab is padded to a multiple of 128
    for lane-dense loads/stores); mask them to -inf so exp() -> 0 and they do
    not perturb max / sum.  Padded rows inside a block hold zeros and always
    have vcols >= 1, so no row ever reduces to all -inf (no NaNs).
    """
    g = pl.program_id(0)
    inv_t = invt_sref[g]
    vcols = vcols_sref[g]
    x = slab_ref[...].astype(jnp.float32) * inv_t
    col = jax.lax.broadcasted_iota(jnp.int32, x.shape, 1)
    x = jnp.where(col < vcols, x, -jnp.inf)
    m = jnp.max(x, axis=-1, keepdims=True)
    e = jnp.exp(x - m)
    s = jnp.sum(e, axis=-1, keepdims=True)
    o_ref[...] = (e * pl.reciprocal(s, approx=True)).astype(o_ref.dtype)


# ----------------------------------------------------------------------------
# Single-tensor wrapper (norm_arch_parameters path)
# ----------------------------------------------------------------------------
def pallas_softmax_lastdim(alphas: jax.Array, temperature: float) -> jax.Array:
    """softmax(alphas / temperature, axis=-1) via the Pallas TPU kernel."""
    orig_shape = alphas.shape
    a2d = alphas.reshape(1, -1) if alphas.ndim <= 1 else alphas.reshape(
        -1, orig_shape[-1])
    rows, cols = a2d.shape
    sublane = _native_sublane(a2d.dtype)

    # Row tile from a VMEM byte budget (f32 compute word), dtype-aware sublane.
    bytes_per_row = cols * 4
    rows_budget = max(sublane,
                      (_VMEM_BUDGET_BYTES // max(1, bytes_per_row))
                      // sublane * sublane)
    tile_cap = min(_MAX_TILE_ROWS, rows_budget)
    if rows <= tile_cap:
        tile_r, grid = rows, (1,)        # full-extent block: no padding at all
    else:
        tile_r, grid = tile_cap, (pl.cdiv(rows, tile_r := tile_cap),)
        # partial last tile handled by Pallas (no jnp.pad round-trip)

    inv_t = jnp.asarray([1.0 / float(temperature)], dtype=jnp.float32)
    cost = pl.CostEstimate(flops=3 * rows * cols,
                           transcendentals=rows * cols,
                           bytes_accessed=2 * rows * cols * a2d.dtype.itemsize)

    out = pl.pallas_call(
        _softmax_kernel,
        out_shape=jax.ShapeDtypeStruct((rows, cols), a2d.dtype),
        grid_spec=pltpu.PrefetchScalarGridSpec(
            num_scalar_prefetch=1,
            grid=grid,
            in_specs=[pl.BlockSpec((tile_r, cols), lambda i, it: (i, 0))],
            out_specs=pl.BlockSpec((tile_r, cols), lambda i, it: (i, 0))),
        compiler_params=pltpu.CompilerParams(
            dimension_semantics=("parallel",)),   # shards rows on v7x (2 TCs)
        cost_estimate=cost,
    )(inv_t, a2d)
    return out.reshape(orig_shape)


# ----------------------------------------------------------------------------
# Packed all-parameters runner (one pallas_call for every arch parameter)
# ----------------------------------------------------------------------------
def _make_packed_runner(meta, row_offs, tile_r, padded_cols, total_rows,
                        rowblk, vcols):
    n_steps = int(rowblk.shape[0])
    cost = pl.CostEstimate(flops=3 * total_rows * padded_cols,
                           transcendentals=total_rows * padded_cols,
                           bytes_accessed=2 * total_rows * padded_cols * 4)

    def run(slab, invt_steps):
        out = pl.pallas_call(
            _packed_softmax_kernel,
            out_shape=jax.ShapeDtypeStruct((total_rows, padded_cols),
                                           jnp.float32),
            grid_spec=pltpu.PrefetchScalarGridSpec(
                num_scalar_prefetch=3,
                grid=(n_steps,),
                in_specs=[pl.BlockSpec((tile_r, padded_cols),
                                       lambda g, rb, it, vc: (rb[g], 0))],
                out_specs=pl.BlockSpec((tile_r, padded_cols),
                                       lambda g, rb, it, vc: (rb[g], 0))),
            # output block index is data-dependent (scalar-prefetched); blocks
            # are disjoint by construction but declared "arbitrary" for safety.
            compiler_params=pltpu.CompilerParams(
                dimension_semantics=("arbitrary",)),
            cost_estimate=cost,
        )(rowblk, invt_steps, vcols, slab)

        # Static unpack: slices/reshapes stay inside this one jitted program.
        results = {}
        for (name, shp, rows, cols, dt), ro in zip(meta, row_offs):
            results[name] = out[ro:ro + rows, :cols].reshape(shp).astype(dt)
        return results

    return jax.jit(run)


# ----------------------------------------------------------------------------
# Minimal JAX port of SearchModule's arch-parameter bookkeeping.
# ----------------------------------------------------------------------------
class SearchModuleJAX:
    def __init__(self):
        self._arch_parameters = {}
        self._temperatures = {}
        self._key = jax.random.PRNGKey(0)
        self._pack = None        # packed slab + compiled runner (persistent)
        self._invt_cache = None  # (temperature signature, per-step inv_t)

    # -- parameter / temperature bookkeeping ---------------------------------
    def init_arch_parameters(self, arch_name, *shape):
        self._key, sub = jax.random.split(self._key)
        # torch: 0.001 * randn(*shape)
        arch_param = 0.001 * jax.random.normal(sub, shape, dtype=jnp.float32)
        self._arch_parameters[arch_name] = arch_param
        setattr(self, arch_name, arch_param)
        self._temperatures[arch_name] = 1.0
        self._pack = None          # invalidate packed-slab cache
        self._invt_cache = None

    def get_arch_parameters_name(self, alpha):
        # NOTE: identity match, same semantics as the torch reference; a
        # jit/device_put'd copy will not match and falls back to T=1.0.
        for k, v in self._arch_parameters.items():
            if v is alpha:
                return k
        raise ValueError("Can not find the arch parameter")

    def get_temperature(self, name):
        return self._temperatures.get(name, 1.0)

    def set_temperature(self, name, value):
        if name is None or name == "all":
            for n in self._temperatures:
                self._temperatures[n] = value
        else:
            self._temperatures[name] = value
        self._invt_cache = None    # slab/runner stay valid; only inv_t changes

    # -- packed-slab construction (runs once, cached) -------------------------
    def _build_pack(self):
        names = list(self._arch_parameters.keys())
        meta = []
        for name in names:
            p = self._arch_parameters[name]
            shp = tuple(p.shape)
            cols = shp[-1] if p.ndim >= 1 else 1
            rows = 1 if p.ndim <= 1 else int(math.prod(shp[:-1]))
            meta.append((name, shp, rows, cols, p.dtype))

        sublane = max(_native_sublane(m[4]) for m in meta)
        max_cols = max(m[3] for m in meta)
        padded_cols = _round_up(max_cols, 128)          # lane-dense stores
        max_rows = max(m[2] for m in meta)

        bytes_per_row = padded_cols * 4
        rows_budget = max(sublane,
                          (_VMEM_BUDGET_BYTES // bytes_per_row)
                          // sublane * sublane)
        tile_r = max(sublane, min(_MAX_TILE_ROWS, rows_budget,
                                  _round_up(max_rows, sublane)))

        # Each tensor occupies a block-aligned row region of the slab.
        row_offs, off = [], 0
        for (_, _, rows, _, _) in meta:
            row_offs.append(off)
            off += _round_up(rows, tile_r)
        total_rows = off

        slab = jnp.zeros((total_rows, padded_cols), jnp.float32)
        for (name, shp, rows, cols, _), ro in zip(meta, row_offs):
            p2d = self._arch_parameters[name].reshape(rows, cols)
            slab = slab.at[ro:ro + rows, :cols].set(p2d.astype(jnp.float32))

        # Per-grid-step metadata: row-block index, owning tensor, valid cols.
        rowblk, tidx, vcols = [], [], []
        for t, ((name, shp, rows, cols, _), ro) in enumerate(zip(meta, row_offs)):
            nblk = _round_up(rows, tile_r) // tile_r
            for b in range(nblk):
                rowblk.append(ro // tile_r + b)
                tidx.append(t)
                vcols.append(cols)
        rowblk = jnp.asarray(rowblk, jnp.int32)
        vcols = jnp.asarray(vcols, jnp.int32)

        runner = _make_packed_runner(meta, row_offs, tile_r, padded_cols,
                                     total_rows, rowblk, vcols)
        self._pack = dict(meta=meta, tidx=tuple(tidx), runner=runner, slab=slab)

    def _invt_steps(self):
        sig = tuple(float(self._temperatures[m[0]]) for m in self._pack["meta"])
        if self._invt_cache is None or self._invt_cache[0] != sig:
            per_step = [1.0 / sig[t] for t in self._pack["tidx"]]
            self._invt_cache = (sig, jnp.asarray(per_step, jnp.float32))
        return self._invt_cache[1]

    # -- normalization entry points -------------------------------------------
    def norm_arch_parameters(self, alphas, gumbel=False, temperature=None):
        """softmax(alphas / T, axis=-1) for a single arch-parameter tensor."""
        if temperature is None:
            try:
                temperature = self.get_temperature(
                    self.get_arch_parameters_name(alphas))
            except Exception:
                temperature = 1.0
        # TODO(synk): gumbel=True (hard gumbel-softmax sampling) not ported; it
        # depends on an external `gumbel_softmax` helper and RNG sampling.
        return pallas_softmax_lastdim(alphas, float(temperature))

    def norm_all_arch_parameters(self):
        """Normalize ALL registered arch parameters with ONE pallas_call over
        a persistent lane-dense packed slab (built once, reused every call)."""
        if not self._arch_parameters:
            return {}
        if self._pack is None:
            self._build_pack()
        return self._pack["runner"](self._pack["slab"], self._invt_steps())

    # -- misc glue -------------------------------------------------------------
    def get_reserved_idx(self, num_reserved, weight):
        # top-k index selection is cheap glue; done in plain JAX.
        return [int(x) for x in jax.lax.top_k(weight, num_reserved)[1]]

    def forward(self, x):
        # Base class defines no forward compute (raises NotImplementedError in
        # the reference); kept for API parity.
        raise NotImplementedError("No implementation")


# ----------------------------------------------------------------------------
# Demo / smoke test.
# ----------------------------------------------------------------------------
if __name__ == "__main__":
    mod = SearchModuleJAX()
    # Typical NAS arch parameters: edges x candidate ops (mixed widths/shapes).
    mod.init_arch_parameters("alphas_normal", 8, 32)
    mod.init_arch_parameters("alphas_reduce", 8, 32)
    mod.init_arch_parameters("betas", 14, 7)      # non-multiple-of-8/128 dims
    mod.init_arch_parameters("gammas", 4, 16)
    mod.init_arch_parameters("etas", 6)           # 1-D arch parameter
    mod.set_temperature("alphas_normal", 0.5)
    mod.set_temperature("alphas_reduce", 2.0)
    mod.set_temperature("gammas", 0.25)

    # Batched path: ONE kernel launch for all tensors.
    all_w = jax.block_until_ready(mod.norm_all_arch_parameters())

    ok = True
    for name, p in mod._arch_parameters.items():
        t = mod.get_temperature(name)
        ref = jax.nn.softmax(p / t, axis=-1)
        w = all_w[name]
        ok &= (w.shape == p.shape)
        ok &= bool(jnp.allclose(w, ref, rtol=3e-3, atol=1e-4))
        ok &= bool(jnp.allclose(jnp.sum(w, axis=-1), 1.0, atol=3e-3))

    # Temperature change: packed slab + compiled runner reused, only the tiny
    # per-step inv_t vector is rebuilt.
    mod.set_temperature("betas", 3.0)
    all_w2 = jax.block_until_ready(mod.norm_all_arch_parameters())
    ref_b = jax.nn.softmax(mod._arch_parameters["betas"] / 3.0, axis=-1)
    ok &= bool(jnp.allclose(all_w2["betas"], ref_b, rtol=3e-3, atol=1e-4))

    # Single-tensor path (API parity with norm_arch_parameters).
    alphas = mod._arch_parameters["alphas_normal"]
    w1 = jax.block_until_ready(mod.norm_arch_parameters(alphas))
    ref1 = jax.nn.softmax(alphas / mod.get_temperature("alphas_normal"), axis=-1)
    ok &= bool(jnp.allclose(w1, ref1, rtol=3e-3, atol=1e-4))

    # Exercise the top-k reserved-idx helper.
    _ = mod.get_reserved_idx(4, w1[0])

    assert ok, "mismatch vs reference softmax"
    print("KERNEL_OK")
</pallas_src>

<mosaic_0001>
module attributes {stable_mosaic.version = 11 : i64} {
  func.func @_packed_softmax_kernel(%arg0: i32, %arg1: memref<5xi32, #tpu.memory_space<smem>>, %arg2: memref<5xf32, #tpu.memory_space<smem>>, %arg3: memref<5xi32, #tpu.memory_space<smem>>, %arg4: memref<16x128xf32, #tpu.memory_space<vmem>>, %arg5: memref<16x128xf32, #tpu.memory_space<vmem>>) attributes {dimension_semantics = [#tpu.dimension_semantics<arbitrary>], iteration_bounds = array<i64: 5>, scalar_prefetch = 3 : i64, scratch_operands = 0 : i64, tpu.core_type = #tpu.core_type<tc>, window_params = [{transform_indices = @transform_0, window_bounds = array<i64: 16, 128>}, {transform_indices = @transform_1, window_bounds = array<i64: 16, 128>}]} {
    %0 = arith.index_cast %arg0 : i32 to index
    %1 = memref.load %arg2[%0] : memref<5xf32, #tpu.memory_space<smem>>
    %2 = arith.index_cast %arg0 : i32 to index
    %3 = memref.load %arg3[%2] : memref<5xi32, #tpu.memory_space<smem>>
    %c0 = arith.constant 0 : index
    %c0_0 = arith.constant 0 : index
    %4 = vector.load %arg4[%c0, %c0_0] : memref<16x128xf32, #tpu.memory_space<vmem>>, vector<16x128xf32>
    %5 = vector.broadcast %1 : f32 to vector<16x128xf32>
    %6 = arith.mulf %4, %5 : vector<16x128xf32>
    %7 = tpu.iota {dimensions = array<i32: 1>} : vector<16x128xi32>
    %8 = vector.broadcast %3 : i32 to vector<16x128xi32>
    %9 = arith.cmpi slt, %7, %8 : vector<16x128xi32>
    %cst = arith.constant 0xFF800000 : f32
    %10 = vector.broadcast %cst : f32 to vector<16x128xf32>
    %11 = arith.select %9, %6, %10 : vector<16x128xi1>, vector<16x128xf32>
    %cst_1 = arith.constant dense<0xFF800000> : vector<16xf32>
    %12 = vector.multi_reduction <maximumf>, %11, %cst_1 [1] : vector<16x128xf32> to vector<16xf32>
    %13 = vector.shape_cast %12 : vector<16xf32> to vector<16x1xf32>
    %14 = vector.broadcast %13 : vector<16x1xf32> to vector<16x128xf32>
    %15 = arith.subf %11, %14 : vector<16x128xf32>
    %16 = math.exp %15 : vector<16x128xf32>
    %cst_2 = arith.constant dense<0.000000e+00> : vector<16xf32>
    %17 = vector.multi_reduction <add>, %16, %cst_2 [1] : vector<16x128xf32> to vector<16xf32>
    %18 = vector.shape_cast %17 : vector<16xf32> to vector<16x1xf32>
    %19 = tpu.reciprocal %18 {approx = true} : vector<16x1xf32> -> vector<16x1xf32>
    %20 = vector.broadcast %19 : vector<16x1xf32> to vector<16x128xf32>
    %21 = arith.mulf %16, %20 : vector<16x128xf32>
    %c0_3 = arith.constant 0 : index
    %c0_4 = arith.constant 0 : index
    %22 = vector.load %arg5[%c0_3, %c0_4] : memref<16x128xf32, #tpu.memory_space<vmem>>, vector<16x128xf32>
    tpu.vector_store %arg5[%c0_3, %c0_4], %21 {strides = array<i32>} : memref<16x128xf32, #tpu.memory_space<vmem>>, vector<16x128xf32>,
    return
  }
  func.func @transform_0(%arg0: i32, %arg1: memref<5xi32, #tpu.memory_space<smem>>, %arg2: memref<5xf32, #tpu.memory_space<smem>>, %arg3: memref<5xi32, #tpu.memory_space<smem>>) -> (i32, i32) {
    %0 = arith.index_cast %arg0 : i32 to index
    %1 = memref.load %arg1[%0] : memref<5xi32, #tpu.memory_space<smem>>
    %c0_i32 = arith.constant 0 : i32
    %c0_i32_0 = arith.constant 0 : i32
    return %1, %c0_i32 : i32, i32
  }
  func.func @transform_1(%arg0: i32, %arg1: memref<5xi32, #tpu.memory_space<smem>>, %arg2: memref<5xf32, #tpu.memory_space<smem>>, %arg3: memref<5xi32, #tpu.memory_space<smem>>) -> (i32, i32) {
    %0 = arith.index_cast %arg0 : i32 to index
    %1 = memref.load %arg1[%0] : memref<5xi32, #tpu.memory_space<smem>>
    %c0_i32 = arith.constant 0 : i32
    %c0_i32_0 = arith.constant 0 : i32
    return %1, %c0_i32 : i32, i32
  }
}

</mosaic_0001>

<llo_original>
// kernel: run.1
$region0: #{run.1}
  #allocation0 [shape = 'u32[]', space=smem, size = 0x4, offset = 0x4, fixed_abs, tag = 'smem constant byte address 0x4 - core index']
  #allocation1 [shape = 'u32[144,128]{1,0:T(1,128)}', space=vmem, size = 0x12000, scoped, tag = 'internal scratch']
  #allocation2 [shape = 's32[1]{0}', space=sflag, size = 0x4, scoped, tag = 'scoped memory for run.1']
  #allocation3 [shape = 'u8[512]{0}', space=smem, size = 0x200, scoped, tag = 'prefetched SMEM operand 0']
  #allocation4 [shape = 'u8[512]{0}', space=smem, size = 0x200, scoped, tag = 'prefetched SMEM operand 1']
  #allocation5 [shape = 'u8[512]{0}', space=smem, size = 0x200, scoped, tag = 'prefetched SMEM operand 2']
  %s0 = inlined_call_operand.vmem [shape: s32[5], index: 0, kind: input, shape index: {}]
  %s1 = inlined_call_operand.vmem [shape: f32[5], index: 1, kind: input, shape index: {}]
  %s2 = inlined_call_operand.vmem [shape: s32[5], index: 2, kind: input, shape index: {}]
  %s3 = inlined_call_operand.hbm [shape: f32[80,128], index: 3, kind: input, shape index: {}]
  %s4 = inlined_call_operand.vmem [shape: f32[80,128], index: 4, kind: output, shape index: {}]
  %s5 = sld [smem:[#allocation0]]
  $region41: #{run.1} parent=0
    _
  %s7 = ssub.s32 1, %s5
  %s8 = scalar_select 0, %s7, %s5
  %s9 = sshll.u32 %s0, 4
  %s10 = int_to_ptr.vmem [resolvable:$true] %s9
  %12 = dma.vmem_to_smem %s10, 16, [#allocation3], [#allocation2]
  %s13 = sshll.u32 %s1, 4
  %s14 = int_to_ptr.vmem [resolvable:$true] %s13
  %16 = dma.vmem_to_smem %s14, 16, [#allocation4], [#allocation2]
  %s17 = sshll.u32 %s2, 4
  %s18 = int_to_ptr.vmem [resolvable:$true] %s17
  %20 = dma.vmem_to_smem %s18, 16, [#allocation5], [#allocation2]
  %21 = dma.done [#allocation2], 48
  %22 = sfence
  $region1: #{run.1} parent=0
    #allocation6 [shape = 'u8[16384]{0}', space=vmem, size = 0x4000, scoped, tag = 'input window, operand 3']
    #allocation7 [shape = 's32[2]{0}', space=sflag, size = 0x8, scoped, tag = 'scoped memory for run.1']
    %23 = vsyncpa [#allocation7], 0
    %s24 = scalar_lea.sflag [#allocation7], 1
    %25 = vsyncpa %s24, 0
    loop: start=0, step=1, limit=7
    $region2: #{run.1} parent=1 // loop_pre_header
      _
    $region3: #{run.1} parent=1 // loop_header
      %s27 = sphi 0, %s31
      %p28 = scmp.ge.s32.totalorder %s27, 7
      %s39 = sphi 0, %s41
      %s42 = sphi 0, %s39
      %s43 = sphi 0, %s42
      %s59 = sphi 0, %s43
      %s67 = sphi 0, %s69
      %s70 = sphi 0, %s67
      %s71 = sphi 0, %s70
      %s87 = sphi 0, %s71
    $region4: #{run.1} parent=1 // loop_header_branch
      %30 = sbr.rel (%p28) target = $region8
    $region5: #{run.1} parent=1 // loop_body
      %s32 = ssub.s32 %s27, 1
      %s33 = ssub.s32 %s27, 2
      %s34 = sadd.s32 %s27, 1
      %s35 = sld [smem:[#allocation3 + %s27]]
      %s36 = sld [smem:[#allocation3 + %s34]]
      %s37 = ssub.s32 %s35, %s36
      %p38 = scmp.eq.s32.totalorder %s37, 0
      %s40 = sadd.s32 %s39, 1
      %s41 = scalar_select %p38, %s39, %s40
      %p44 = pneg %p38
      %p45 = scmp.eq.s32.totalorder %s27, 4
      %p46 = por %p44, %p45
      %p47 = scmp.ne.s32.totalorder %s39, %s42
      %p48 = scmp.eq.s32.totalorder %s27, 0
      %p49 = por %p47, %p48
      %p50 = scmp.ne.s32.totalorder %s39, %s42
      %p51 = scmp.eq.s32.totalorder %s32, 4
      %p52 = por %p50, %p51
      %p53 = scmp.ne.s32.totalorder %s42, %s43
      %p54 = scmp.eq.s32.totalorder %s32, 0
      %p55 = por %p53, %p54
      %p56 = scmp.ne.s32.totalorder %s42, %s43
      %p57 = scmp.eq.s32.totalorder %s33, 4
      %p58 = por %p56, %p57
      %p60 = scmp.ne.s32.totalorder %s43, %s59
      %p61 = scmp.eq.s32.totalorder %s33, 0
      %p62 = por %p60, %p61
      %s63 = sld [smem:[#allocation3 + %s27]]
      %s64 = sld [smem:[#allocation3 + %s34]]
      %s65 = ssub.s32 %s63, %s64
      %p66 = scmp.eq.s32.totalorder %s65, 0
      %s68 = sadd.s32 %s67, 1
      %s69 = scalar_select %p66, %s67, %s68
      %p72 = pneg %p66
      %p73 = scmp.eq.s32.totalorder %s27, 4
      %p74 = por %p72, %p73
      %p75 = scmp.ne.s32.totalorder %s67, %s70
      %p76 = scmp.eq.s32.totalorder %s27, 0
      %p77 = por %p75, %p76
      %p78 = scmp.ne.s32.totalorder %s67, %s70
      %p79 = scmp.eq.s32.totalorder %s32, 4
      %p80 = por %p78, %p79
      %p81 = scmp.ne.s32.totalorder %s70, %s71
      %p82 = scmp.eq.s32.totalorder %s32, 0
      %p83 = por %p81, %p82
      %p84 = scmp.ne.s32.totalorder %s70, %s71
      %p85 = scmp.eq.s32.totalorder %s33, 4
      %p86 = por %p84, %p85
      %p88 = scmp.ne.s32.totalorder %s71, %s87
      %p89 = scmp.eq.s32.totalorder %s33, 0
      %p90 = por %p88, %p89
      %p91 = scmp.le.s32.totalorder 1, %s27
      %p92 = scmp.lt.s32.totalorder %s27, 6
      %p93 = pnand %p91, %p92
      %p94 = pneg %p93
      // Predicated region
      $region9: #{run.1} parent=5 // pred_check
        _
      $region10: #{run.1} parent=5 // pred_check_branch
        %96 = sbr.rel (%p93) target = $region12
      $region11: #{run.1} parent=5 // pred_region
        %s97 = ssub.s32 %s27, 1
      $region12: #{run.1} parent=5 // pred_fallthru
        _
      %p98 = scmp.lt.s32.totalorder %s27, 5
      // Predicated region
      $region13: #{run.1} parent=5 // pred_check
        %p99 = pneg %p98
      $region14: #{run.1} parent=5 // pred_check_branch
        %101 = sbr.rel (%p99) target = $region16
      $region15: #{run.1} parent=5 // pred_region
        // Predicated region
        $region17: #{run.1} parent=15 // pred_check
          %p102 = pneg %p49
        $region18: #{run.1} parent=15 // pred_check_branch
          %104 = sbr.rel (%p102) target = $region20
        $region19: #{run.1} parent=15 // pred_region
          %s105 = sand.u32 %s39, 1
          %s106 = scalar_lea.sflag [#allocation7], %s105
          %s107 = sand.u32 %s39, 1
          %s108 = smul.addr %s107, 16
          %s109 = scalar_lea.vmem [#allocation6], %s108
          %s110 = sld [smem:[#allocation3 + %s27]]
          %s111 = smul.u32 2, %s110
          %s113 = ssub.s32 256, 256
          %114 = vsyncadd %s106, %s113
          %s115 = smul.addr %s111, 128
          %s116 = scalar_lea.hbm %s3, %s115
          %s117 = sshll.u32 %s109, 4
          %s118 = int_to_ptr.vmem [resolvable:$true] %s117
          %123 = dma.hbm_to_vmem [thread:$0]  %s116, 256, %s118, %s106, 128, 128, 8
        $region20: #{run.1} parent=15 // pred_fallthru
          _
      $region16: #{run.1} parent=5 // pred_fallthru
        _
      %p124 = scmp.le.s32.totalorder 1, %s27
      %p125 = scmp.lt.s32.totalorder %s27, 6
      %p126 = pnand %p124, %p125
      %p127 = pneg %p126
      // Predicated region
      $region21: #{run.1} parent=5 // pred_check
        _
      $region22: #{run.1} parent=5 // pred_check_branch
        %129 = sbr.rel (%p126) target = $region24
      $region23: #{run.1} parent=5 // pred_region
        %s130 = ssub.s32 %s27, 1
        %s131 = sand.u32 %s42, 1
        %s132 = scalar_lea.sflag [#allocation7], %s131
        %s133 = sand.u32 %s42, 1
        %s134 = smul.addr %s133, 16
        %s135 = scalar_lea.vmem [#allocation6], %s134
        // Predicated region
        $region25: #{run.1} parent=23 // pred_check
          %p136 = pneg %p55
        $region26: #{run.1} parent=23 // pred_check_branch
          %138 = sbr.rel (%p136) target = $region28
        $region27: #{run.1} parent=23 // pred_region
          %139 = dma.done %s132, 256
        $region28: #{run.1} parent=23 // pred_fallthru
          _
        %s140 = sand.u32 %s42, 1
        %s141 = scalar_lea.sflag [#allocation7], %s140
        %s142 = sand.u32 %s42, 1
        %s143 = smul.addr %s142, 16
        %s144 = scalar_lea.vmem [#allocation6], %s143
        %p145 = pneg %p55
        %p146 = pneg %p52
        %p147 = pneg %p83
        %p148 = pneg %p80
        %s149 = sld [smem:[#allocation3 + %s32]]
        %s150 = smul.u32 2, %s149
        %p151 = scmp.lt.s32.totalorder %s150, 9
        %s152 = scalar_select %p151, %s150, 9
        %s153 = smul.addr %s152, 8
        %s154 = scalar_lea.vmem %s4, %s153
        %s155 = sld [smem:[#allocation3 + %s32]]
        %s156 = smul.u32 2, %s155
        %s157 = sld [smem:[#allocation3 + %s32]]
        %s158 = smul.u32 2, %s157
        %p159 = scmp.lt.s32.totalorder %s158, 9
        %s160 = scalar_select %p159, %s158, 9
        %s161 = smul.addr %s160, 8
        %s162 = scalar_lea.vmem %s4, %s161
        %s163 = sld [smem:[#allocation3 + %s32]]
        %s164 = smul.u32 2, %s163
        %s165 = sld [smem:[#allocation4 + %s32]]
        %s166 = sld [smem:[#allocation5 + %s32]]
        %v167 = vld [vmem:[%s135] sm:$0xff]
        %v168 = vld [vmem:[%s135 + $0x8] sm:$0xff]
        %v169 = vstv %s165
        %v170 = vmul.f32 %v167, %v169
        %v171 = vmul.f32 %v168, %v169
        %v172 = vlaneseq
        %v173 = vand.u32 %v172, 127
        %v174 = vstv %s166
        %vm175 = vcmp.lt.s32.totalorder %v173, %v174
        %v176 = vsel %vm175, %v170, -inf
        %v177 = vsel %vm175, %v171, -inf
        %178 = vmax.xlane.f32.xlu0 %v176
        %v179 = vpop.xlane.xlu0 %178
        %180 = vmax.xlane.f32.xlu0 %v177
        %v181 = vpop.xlane.xlu0 %180
        %v182 = vsub.f32 %v176, %v179
        %v183 = vsub.f32 %v177, %v181
        %v184 = vmul.f32 %v182, 1.442695
        %v185 = vpow.pop %v184
        %v186 = vmul.f32 %v183, 1.442695
        %v187 = vpow.pop %v186
        %188 = vadd.xlane.f32.xlu0 %v185
        %v189 = vpop.xlane.xlu0 %188
        %190 = vadd.xlane.f32.xlu0 %v187
        %v191 = vpop.xlane.xlu0 %190
        %v192 = vrcp.pop %v189
        %v193 = vrcp.pop %v191
        %v194 = vmul.f32 %v185, %v192
        %v195 = vmul.f32 %v187, %v193
        %196 = vst [vmem:[%s162] sm:$0xff] %v194
        %197 = vst [vmem:[%s162 + $0x8] sm:$0xff] %v195
        %s198 = sld [smem:[#allocation3 + %s32]]
        %s199 = smul.u32 2, %s198
        %p200 = scmp.lt.s32.totalorder %s199, 9
        %s201 = scalar_select %p200, %s199, 9
        %s202 = smul.addr %s201, 8
        %s203 = scalar_lea.vmem %s4, %s202
        // Predicated region
        $region29: #{run.1} parent=23 // pred_check
          %p204 = pneg %p80
        $region30: #{run.1} parent=23 // pred_check_branch
          %206 = sbr.rel (%p204) target = $region32
        $region31: #{run.1} parent=23 // pred_region
          %s207 = sld [smem:[#allocation3 + %s32]]
          %s208 = smul.u32 2, %s207
        $region32: #{run.1} parent=23 // pred_fallthru
          _
      $region24: #{run.1} parent=5 // pred_fallthru
        _
      %p209 = scmp.le.s32.totalorder 2, %s27
      // Predicated region
      $region33: #{run.1} parent=5 // pred_check
        %p210 = pneg %p209
      $region34: #{run.1} parent=5 // pred_check_branch
        %212 = sbr.rel (%p210) target = $region36
      $region35: #{run.1} parent=5 // pred_region
        %s213 = ssub.s32 %s27, 2
        // Predicated region
        $region37: #{run.1} parent=35 // pred_check
          %p214 = pneg %p86
        $region38: #{run.1} parent=35 // pred_check_branch
          %216 = sbr.rel (%p214) target = $region40
        $region39: #{run.1} parent=35 // pred_region
          %s217 = sld [smem:[#allocation3 + %s33]]
          %s218 = smul.u32 2, %s217
          %p219 = scmp.lt.s32.totalorder %s218, 9
          %s220 = scalar_select %p219, %s218, 9
          %s221 = smul.addr %s220, 8
          %s222 = scalar_lea.vmem %s4, %s221
        $region40: #{run.1} parent=35 // pred_fallthru
          _
      $region36: #{run.1} parent=5 // pred_fallthru
        _
    $region6: #{run.1} parent=1 // loop_footer
      %s31 = sadd.s32 1, %s27
    $region7: #{run.1} parent=1 // loop_footer_branch
      %26 = sbr.rel target = $region3
    $region8: #{run.1} parent=1 // loop_exit
      _
    %223 = vsyncpa [#allocation7], 1
    %s224 = scalar_lea.sflag [#allocation7], 1
    %225 = vsyncpa %s224, 1

</llo_original>
